<compile_context>
chip_gen: v7x
topology: tpu7x:2x2x1
jax: 0.10.0
libtpu: 0.0.40
codegen_flags: <defaults>
</compile_context>

<pallas_src>
import functools

import jax
import jax.numpy as jnp
from jax.experimental import pallas as pl
from jax.experimental.pallas import tpu as pltpu


# Tile the vocab axis when the 128-padded vocab exceeds this many columns.
_O_TILE_MAX = 2048


def joiner_kernel(enc_ref, dec_ref, w_ref, b_ref, out_ref, act_ref, *,
                  compute_dtype):
    # enc_ref: (1, tT, Dp) f32      dec_ref: (1, tU, Dp) f32
    # w_ref:   (Dp, oT)    bf16     b_ref:   (1, oT) f32
    # out_ref: (1, tT, tU, oOut)    act_ref: (tT*tU, Dp) bf16 scratch
    _, t_t, t_u, o_out = out_ref.shape

    # Activations are computed once per (t, n, u) tile and reused across the
    # (innermost, "arbitrary") vocab-tile axis via the persistent VMEM scratch.
    @pl.when(pl.program_id(3) == 0)
    def _():
        enc = enc_ref[0].astype(compute_dtype)        # (tT, Dp)
        dec = dec_ref[0].astype(compute_dtype)        # (tU, Dp)
        x = enc[:, None, :] + dec[None, :, :]         # (tT, tU, Dp)
        act_ref[...] = jnp.tanh(x).astype(act_ref.dtype).reshape(act_ref.shape)

    # bf16 operands into the MXU, f32 accumulation.
    logits = jnp.dot(act_ref[...], w_ref[...],
                     preferred_element_type=jnp.float32)   # (tT*tU, oT)
    logits = logits + b_ref[...]
    # Drop padded vocab columns (no-op when the O axis is tiled) and store.
    logits = logits[:, :o_out].reshape(1, t_t, t_u, o_out)
    out_ref[...] = logits.astype(out_ref.dtype)


def _round_up(x, m):
    return ((x + m - 1) // m) * m


def _working_set_bytes(t, u, d_pad, o_tile, act_bytes, out_bytes):
    enc = 2 * t * d_pad * 4                    # double-buffered enc tile (f32)
    dec = 2 * u * d_pad * 4                    # double-buffered dec tile (f32)
    w = 2 * d_pad * o_tile * 2                 # double-buffered bf16 weight tile
    b = 2 * o_tile * 4
    out = 2 * t * u * o_tile * out_bytes       # double-buffered output tile
    act = t * u * d_pad * 2                    # bf16 act scratch (persistent)
    tmp = t * u * d_pad * (act_bytes + 2)      # add/tanh intermediates + bf16 cast
    logits = t * u * o_tile * 4                # f32 logits before the store
    return enc + dec + w + b + out + act + tmp + logits


def _choose_tiles(T, U, d_pad, o_tile, act_bytes, out_bytes, budget):
    # Tiles are multiples of 8 (sublane-aligned), capped at the rounded-up
    # extents; they need NOT divide T/U (Pallas masks the boundary blocks).
    t8, u8 = _round_up(T, 8), _round_up(U, 8)
    t_cands = sorted({min(c, t8) for c in (8, 16, 32, 64, 128, 256, 512)},
                     reverse=True)
    u_cands = sorted({min(c, u8) for c in (8, 16, 32, 64, 128, 256)},
                     reverse=True)
    best = None
    for t in t_cands:
        for u in u_cands:
            if _working_set_bytes(t, u, d_pad, o_tile, act_bytes,
                                  out_bytes) > budget:
                continue
            # Prefer the largest tile area, then u a multiple of 16 (bf16
            # sublane packing keeps the (tT,tU,D)->(tT*tU,D) reshape free),
            # then the larger t.
            score = (t * u, u % 16 == 0, t)
            if best is None or score > best[0]:
                best = (score, t, u)
    if best is None:
        return 8, 8   # tiny fallback; vmem_limit is raised to cover it
    return best[1], best[2]


@functools.partial(jax.jit, static_argnames=("out_dtype", "act_dtype"))
def joiner_forward(encoder_out, decoder_out, weight, bias, *,
                   out_dtype=None, act_dtype=None):
    """Joiner forward (training-mode output shape).

    encoder_out: (N, T, D) f32
    decoder_out: (N, U, D) f32
    weight:      (O, D) f32   (PyTorch nn.Linear layout)
    bias:        (O,)   f32
    out_dtype:   output dtype (default: encoder_out.dtype; pass jnp.bfloat16
                 to halve HBM write traffic when downstream tolerates it)
    returns:     (N, T, U, O) logits
    """
    N, T, D = encoder_out.shape
    N2, U, D2 = decoder_out.shape
    assert N == N2 and D == D2
    O = weight.shape[0]
    assert weight.shape == (O, D) and bias.shape == (O,)

    out_dtype = jnp.dtype(encoder_out.dtype if out_dtype is None else out_dtype)

    # Activation compute dtype: bf16 where the VPU/EUP support it (v6e/v7x),
    # f32 on v5e and older.
    if act_dtype is None:
        kind = jax.devices()[0].device_kind.lower()
        f32_gen = any(v in kind for v in ("v2", "v3", "v4", "v5"))
        act_dtype = jnp.float32 if f32_gen else jnp.bfloat16
    act_dtype = jnp.dtype(act_dtype)

    # Pad D (MXU contraction / lane dim) to a multiple of 128 with zeros.
    # tanh(0)=0 against zero weight rows keeps results exact.
    D_pad = _round_up(D, 128)
    if D_pad != D:
        encoder_out = jnp.pad(encoder_out, ((0, 0), (0, 0), (0, D_pad - D)))
        decoder_out = jnp.pad(decoder_out, ((0, 0), (0, 0), (0, D_pad - D)))

    # Lane-dense, zero-padded weight/bias.  Tile the vocab axis for large O.
    O_pad128 = _round_up(max(O, 1), 128)
    if O_pad128 <= _O_TILE_MAX:
        o_tile = O_pad = O_pad128
    else:
        o_tile = _O_TILE_MAX
        O_pad = _round_up(O, o_tile)
    num_o = O_pad // o_tile

    weight_t = jnp.zeros((D_pad, O_pad), jnp.bfloat16)
    weight_t = weight_t.at[:D, :O].set(weight.T.astype(jnp.bfloat16))
    bias_pad = jnp.zeros((1, O_pad), jnp.float32)
    bias_pad = bias_pad.at[:, :O].set(bias.astype(jnp.float32)[None, :])

    # Generation-aware VMEM budget / scoped limit.
    try:
        vmem_cap = int(pltpu.get_tpu_info().vmem_capacity_bytes)
    except Exception:
        vmem_cap = 64 * 1024 * 1024
    budget = min(vmem_cap // 2, 64 * 1024 * 1024)

    act_bytes = act_dtype.itemsize
    out_bytes = out_dtype.itemsize
    t_tile, u_tile = _choose_tiles(T, U, D_pad, o_tile, act_bytes, out_bytes,
                                   budget)
    ws = _working_set_bytes(t_tile, u_tile, D_pad, o_tile, act_bytes, out_bytes)
    vmem_limit = int(min(vmem_cap * 0.85,
                         max(32 * 1024 * 1024, 1.4 * ws)))

    num_t = pl.cdiv(T, t_tile)
    num_u = pl.cdiv(U, u_tile)
    grid = (num_t, N, num_u, num_o)   # largest parallel axis first (v7x megacore)

    # With a single vocab tile, the output block's last dim equals the full
    # (unpadded) O so the kernel writes the final layout directly; with vocab
    # tiling, boundary masking handles a ragged final O block.
    out_lane = O if num_o == 1 else o_tile

    kernel = functools.partial(joiner_kernel, compute_dtype=act_dtype)

    out = pl.pallas_call(
        kernel,
        out_shape=jax.ShapeDtypeStruct((N, T, U, O), out_dtype),
        grid_spec=pltpu.PrefetchScalarGridSpec(
            num_scalar_prefetch=0,
            grid=grid,
            in_specs=[
                pl.BlockSpec((1, t_tile, D_pad), lambda t, n, u, o: (n, t, 0)),
                pl.BlockSpec((1, u_tile, D_pad), lambda t, n, u, o: (n, u, 0)),
                pl.BlockSpec((D_pad, o_tile), lambda t, n, u, o: (0, o)),
                pl.BlockSpec((1, o_tile), lambda t, n, u, o: (0, o)),
            ],
            out_specs=pl.BlockSpec(
                (1, t_tile, u_tile, out_lane), lambda t, n, u, o: (n, t, u, o)
            ),
            scratch_shapes=[pltpu.VMEM((t_tile * u_tile, D_pad), jnp.bfloat16)],
        ),
        compiler_params=pltpu.CompilerParams(
            dimension_semantics=("parallel", "parallel", "parallel", "arbitrary"),
            vmem_limit_bytes=vmem_limit,
        ),
    )(encoder_out, decoder_out, weight_t, bias_pad)

    # TODO(synk): on v5e, a lax.fori_loop sub-blocking of U inside the kernel
    # would further shrink the f32 add/tanh intermediate without reducing the
    # lane-dense output tile; currently the tile chooser just picks smaller
    # tiles for the f32-activation path.
    return out


if __name__ == "__main__":
    # Small, deterministic shapes consistent with the module's forward.
    N, T, U = 2, 8, 8
    input_dim, output_dim = 32, 16

    key = jax.random.PRNGKey(0)
    k_enc, k_dec, k_w, k_b = jax.random.split(key, 4)

    encoder_out = jax.random.normal(k_enc, (N, T, input_dim), dtype=jnp.float32)
    decoder_out = jax.random.normal(k_dec, (N, U, input_dim), dtype=jnp.float32)

    # Deterministic parameter init (shapes per nn.Linear(input_dim, output_dim)).
    bound = 1.0 / (input_dim ** 0.5)
    weight = jax.random.uniform(
        k_w, (output_dim, input_dim), minval=-bound, maxval=bound,
        dtype=jnp.float32,
    )
    bias = jax.random.uniform(
        k_b, (output_dim,), minval=-bound, maxval=bound, dtype=jnp.float32
    )

    logits = joiner_forward(encoder_out, decoder_out, weight, bias)
    logits = jax.block_until_ready(logits)

    # Reference in plain f32 JAX.  The kernel uses bf16 activations / MXU
    # operands, so the tolerance is loosened accordingly.
    x = encoder_out[:, :, None, :] + decoder_out[:, None, :, :]
    ref = jnp.tanh(x) @ weight.T + bias
    assert logits.shape == (N, T, U, output_dim)
    max_err = float(jnp.max(jnp.abs(logits - ref)))
    assert max_err < 5e-2, max_err

    # TODO(synk): eval-mode `.squeeze(2).squeeze(1)` is a metadata-only reshape
    # on the (N, T, U, O) training-mode output; left to the caller.
    print("KERNEL_OK")
</pallas_src>

<mosaic_0001>
module attributes {stable_mosaic.version = 11 : i64} {
  func.func @joiner_kernel(%arg0: i32, %arg1: i32, %arg2: i32, %arg3: i32, %arg4: memref<1x8x128xf32, #tpu.memory_space<vmem>>, %arg5: memref<1x8x128xf32, #tpu.memory_space<vmem>>, %arg6: memref<128x128xbf16, #tpu.memory_space<vmem>>, %arg7: memref<1x128xf32, #tpu.memory_space<vmem>>, %arg8: memref<1x8x8x16xf32, #tpu.memory_space<vmem>>, %arg9: memref<64x128xbf16, #tpu.memory_space<vmem>>) attributes {dimension_semantics = [#tpu.dimension_semantics<parallel>, #tpu.dimension_semantics<parallel>, #tpu.dimension_semantics<parallel>, #tpu.dimension_semantics<arbitrary>], iteration_bounds = array<i64: 1, 2, 1, 1>, scalar_prefetch = 0 : i64, scratch_operands = 1 : i64, tpu.core_type = #tpu.core_type<tc>, window_params = [{transform_indices = @transform_0, window_bounds = array<i64: 1, 8, 128>}, {transform_indices = @transform_1, window_bounds = array<i64: 1, 8, 128>}, {transform_indices = @transform_2, window_bounds = array<i64: 128, 128>}, {transform_indices = @transform_3, window_bounds = array<i64: 1, 128>}, {transform_indices = @transform_4, window_bounds = array<i64: 1, 8, 8, 16>}]} {
    %c0_i32 = arith.constant 0 : i32
    %0 = arith.cmpi eq, %arg3, %c0_i32 : i32
    %1 = arith.extui %0 : i1 to i32
    %c0_i32_0 = arith.constant 0 : i32
    %2 = arith.cmpi ne, %1, %c0_i32_0 : i32
    scf.if %2 {
      %c0_10 = arith.constant 0 : index
      %c0_11 = arith.constant 0 : index
      %c0_12 = arith.constant 0 : index
      %12 = vector.load %arg4[%c0_10, %c0_11, %c0_12] : memref<1x8x128xf32, #tpu.memory_space<vmem>>, vector<1x8x128xf32>
      %13 = vector.shape_cast %12 : vector<1x8x128xf32> to vector<8x128xf32>
      %14 = arith.truncf %13 : vector<8x128xf32> to vector<8x128xbf16>
      %c0_13 = arith.constant 0 : index
      %c0_14 = arith.constant 0 : index
      %c0_15 = arith.constant 0 : index
      %15 = vector.load %arg5[%c0_13, %c0_14, %c0_15] : memref<1x8x128xf32, #tpu.memory_space<vmem>>, vector<1x8x128xf32>
      %16 = vector.shape_cast %15 : vector<1x8x128xf32> to vector<8x128xf32>
      %17 = arith.truncf %16 : vector<8x128xf32> to vector<8x128xbf16>
      %18 = vector.shape_cast %14 : vector<8x128xbf16> to vector<8x1x128xbf16>
      %19 = vector.shape_cast %17 : vector<8x128xbf16> to vector<1x8x128xbf16>
      %20 = vector.broadcast %18 : vector<8x1x128xbf16> to vector<8x8x128xbf16>
      %21 = vector.broadcast %19 : vector<1x8x128xbf16> to vector<8x8x128xbf16>
      %22 = arith.addf %20, %21 : vector<8x8x128xbf16>
      %23 = math.tanh %22 : vector<8x8x128xbf16>
      %24 = vector.shape_cast %23 : vector<8x8x128xbf16> to vector<64x128xbf16>
      %c0_16 = arith.constant 0 : index
      %c0_17 = arith.constant 0 : index
      %25 = vector.load %arg9[%c0_16, %c0_17] : memref<64x128xbf16, #tpu.memory_space<vmem>>, vector<64x128xbf16>
      tpu.vector_store %arg9[%c0_16, %c0_17], %24 {strides = array<i32>} : memref<64x128xbf16, #tpu.memory_space<vmem>>, vector<64x128xbf16>,
    } else {
    }
    %c0 = arith.constant 0 : index
    %c0_1 = arith.constant 0 : index
    %3 = vector.load %arg9[%c0, %c0_1] : memref<64x128xbf16, #tpu.memory_space<vmem>>, vector<64x128xbf16>
    %c0_2 = arith.constant 0 : index
    %c0_3 = arith.constant 0 : index
    %4 = vector.load %arg6[%c0_2, %c0_3] : memref<128x128xbf16, #tpu.memory_space<vmem>>, vector<128x128xbf16>
    %cst = arith.constant dense<0.000000e+00> : vector<64x128xf32>
    %5 = tpu.matmul %3, %4, %cst {dimension_numbers = #tpu.dot_dimension_numbers<[1], [0], [0], [1], [0, 0, 1, 1], [], []>} : vector<64x128xbf16>, vector<128x128xbf16>, vector<64x128xf32> -> vector<64x128xf32>
    %c0_4 = arith.constant 0 : index
    %c0_5 = arith.constant 0 : index
    %6 = vector.load %arg7[%c0_4, %c0_5] : memref<1x128xf32, #tpu.memory_space<vmem>>, vector<1x128xf32>
    %7 = vector.broadcast %6 : vector<1x128xf32> to vector<64x128xf32>
    %8 = arith.addf %5, %7 : vector<64x128xf32>
    %9 = vector.extract_strided_slice %8 {offsets = [0, 0], sizes = [64, 16], strides = [1, 1]} : vector<64x128xf32> to vector<64x16xf32>
    %10 = vector.shape_cast %9 : vector<64x16xf32> to vector<1x8x8x16xf32>
    %c0_6 = arith.constant 0 : index
    %c0_7 = arith.constant 0 : index
    %c0_8 = arith.constant 0 : index
    %c0_9 = arith.constant 0 : index
    %11 = vector.load %arg8[%c0_6, %c0_7, %c0_8, %c0_9] : memref<1x8x8x16xf32, #tpu.memory_space<vmem>>, vector<1x8x8x16xf32>
    tpu.vector_store %arg8[%c0_6, %c0_7, %c0_8, %c0_9], %10 {strides = array<i32>} : memref<1x8x8x16xf32, #tpu.memory_space<vmem>>, vector<1x8x8x16xf32>,
    return
  }
  func.func @transform_0(%arg0: i32, %arg1: i32, %arg2: i32, %arg3: i32) -> (i32, i32, i32) {
    %c0_i32 = arith.constant 0 : i32
    %c0_i32_0 = arith.constant 0 : i32
    return %arg1, %arg0, %c0_i32 : i32, i32, i32
  }
  func.func @transform_1(%arg0: i32, %arg1: i32, %arg2: i32, %arg3: i32) -> (i32, i32, i32) {
    %c0_i32 = arith.constant 0 : i32
    %c0_i32_0 = arith.constant 0 : i32
    return %arg1, %arg2, %c0_i32 : i32, i32, i32
  }
  func.func @transform_2(%arg0: i32, %arg1: i32, %arg2: i32, %arg3: i32) -> (i32, i32) {
    %c0_i32 = arith.constant 0 : i32
    %c0_i32_0 = arith.constant 0 : i32
    return %c0_i32, %arg3 : i32, i32
  }
  func.func @transform_3(%arg0: i32, %arg1: i32, %arg2: i32, %arg3: i32) -> (i32, i32) {
    %c0_i32 = arith.constant 0 : i32
    %c0_i32_0 = arith.constant 0 : i32
    return %c0_i32, %arg3 : i32, i32
  }
  func.func @transform_4(%arg0: i32, %arg1: i32, %arg2: i32, %arg3: i32) -> (i32, i32, i32, i32) {
    %c0_i32 = arith.constant 0 : i32
    return %arg1, %arg0, %arg2, %arg3 : i32, i32, i32, i32
  }
}

</mosaic_0001>

<llo_original>
// kernel: joiner_forward.1
$region0: #{joiner_forward.1}
  #allocation0 [shape = 'u32[]', space=smem, size = 0x4, offset = 0x4, fixed_abs, tag = 'smem constant byte address 0x4 - core index']
  #allocation1 [shape = 'u32[144,128]{1,0:T(1,128)}', space=vmem, size = 0x12000, scoped, tag = 'internal scratch']
  #allocation2 [shape = 'bf16[64,128]{1,0:T(16,128)(2,1)}', space=vmem, size = 0x4000, scoped, tag = 'scratch operand']
  %s0 = inlined_call_operand.vmem [shape: f32[2,8,128], index: 0, kind: input, shape index: {}]
  %s1 = inlined_call_operand.vmem [shape: f32[2,8,128], index: 1, kind: input, shape index: {}]
  %s2 = inlined_call_operand.vmem [shape: bf16[128,128], index: 2, kind: input, shape index: {}]
  %s3 = inlined_call_operand.vmem [shape: f32[1,128], index: 3, kind: input, shape index: {}]
  %s4 = inlined_call_operand.hbm [shape: f32[2,8,8,16], index: 4, kind: output, shape index: {}]
  %s5 = sld [smem:[#allocation0]]
  $region53: #{joiner_forward.1} parent=0
    _
  %s7 = ssub.s32 1, %s5
  %s8 = scalar_select 0, %s7, %s5
  $region1: #{joiner_forward.1} parent=0
    #allocation3 [shape = 'u8[65536]{0}', space=vmem, size = 0x10000, scoped, tag = 'output window, operand 0']
    #allocation4 [shape = 's32[2]{0}', space=sflag, size = 0x8, scoped, tag = 'scoped memory for joiner_forward.1']
    %9 = vsyncpa [#allocation4], 0
    %s10 = scalar_lea.sflag [#allocation4], 1
    %11 = vsyncpa %s10, 0
    loop: start=0, step=1, limit=4
    $region2: #{joiner_forward.1} parent=1 // loop_pre_header
      _
    $region3: #{joiner_forward.1} parent=1 // loop_header
      %s13 = sphi 0, %s17
      %p14 = scmp.ge.s32.totalorder %s13, 4
      %s20 = sphi 0, %s46
      %s21 = sphi 0, %s42
      %s22 = sphi 0, %s38
      %s23 = sphi 0, %s34
      %s24 = sphi 0, %s20
      %s25 = sphi 0, %s21
      %s26 = sphi 0, %s22
      %s27 = sphi 0, %s23
      %s28 = sphi 0, %s24
      %s29 = sphi 0, %s25
      %s30 = sphi 0, %s26
      %s31 = sphi 0, %s27
      %s51 = sphi 0, %s53
      %s54 = sphi 0, %s51
      %s55 = sphi 0, %s54
      %s71 = sphi 0, %s55
      %s79 = sphi 0, %s81
      %s82 = sphi 0, %s79
      %s83 = sphi 0, %s82
      %s99 = sphi 0, %s83
      %s105 = sphi 0, %s107
      %s108 = sphi 0, %s105
      %s109 = sphi 0, %s108
      %s125 = sphi 0, %s109
      %s131 = sphi 0, %s133
      %s134 = sphi 0, %s131
      %s135 = sphi 0, %s134
      %s151 = sphi 0, %s135
      %s163 = sphi 0, %s165
      %s166 = sphi 0, %s163
      %s167 = sphi 0, %s166
      %s183 = sphi 0, %s167
    $region4: #{joiner_forward.1} parent=1 // loop_header_branch
      %16 = sbr.rel (%p14) target = $region8
    $region5: #{joiner_forward.1} parent=1 // loop_body
      %s18 = ssub.s32 %s13, 1
      %s19 = ssub.s32 %s13, 2
      %s32 = sadd.s32 1, %s23
      %p33 = scmp.ge.s32.totalorder %s32, 1
      %s34 = scalar_select %p33, 0, %s32
      %s35 = sadd.s32 1, %s22
      %s36 = scalar_select %p33, %s35, %s22
      %p37 = scmp.ge.s32.totalorder %s36, 1
      %s38 = scalar_select %p37, 0, %s36
      %s39 = sadd.s32 1, %s21
      %s40 = scalar_select %p37, %s39, %s21
      %p41 = scmp.ge.s32.totalorder %s40, 2
      %s42 = scalar_select %p41, 0, %s40
      %s43 = sadd.s32 1, %s20
      %s44 = scalar_select %p41, %s43, %s20
      %p45 = scmp.ge.s32.totalorder %s44, 1
      %s46 = scalar_select %p45, 0, %s44
      %s47 = ssub.s32 %s21, %s42
      %s48 = ssub.s32 %s20, %s46
      %s49 = sor.u32 %s47, %s48
      %p50 = scmp.eq.s32.totalorder %s49, 0
      %s52 = sadd.s32 %s51, 1
      %s53 = scalar_select %p50, %s51, %s52
      %p56 = pneg %p50
      %p57 = scmp.eq.s32.totalorder %s13, 1
      %p58 = por %p56, %p57
      %p59 = scmp.ne.s32.totalorder %s51, %s54
      %p60 = scmp.eq.s32.totalorder %s13, 0
      %p61 = por %p59, %p60
      %p62 = scmp.ne.s32.totalorder %s51, %s54
      %p63 = scmp.eq.s32.totalorder %s18, 1
      %p64 = por %p62, %p63
      %p65 = scmp.ne.s32.totalorder %s54, %s55
      %p66 = scmp.eq.s32.totalorder %s18, 0
      %p67 = por %p65, %p66
      %p68 = scmp.ne.s32.totalorder %s54, %s55
      %p69 = scmp.eq.s32.totalorder %s19, 1
      %p70 = por %p68, %p69
      %p72 = scmp.ne.s32.totalorder %s55, %s71
      %p73 = scmp.eq.s32.totalorder %s19, 0
      %p74 = por %p72, %p73
      %s75 = ssub.s32 %s21, %s42
      %s76 = ssub.s32 %s22, %s38
      %s77 = sor.u32 %s75, %s76
      %p78 = scmp.eq.s32.totalorder %s77, 0
      %s80 = sadd.s32 %s79, 1
      %s81 = scalar_select %p78, %s79, %s80
      %p84 = pneg %p78
      %p85 = scmp.eq.s32.totalorder %s13, 1
      %p86 = por %p84, %p85
      %p87 = scmp.ne.s32.totalorder %s79, %s82
      %p88 = scmp.eq.s32.totalorder %s13, 0
      %p89 = por %p87, %p88
      %p90 = scmp.ne.s32.totalorder %s79, %s82
      %p91 = scmp.eq.s32.totalorder %s18, 1
      %p92 = por %p90, %p91
      %p93 = scmp.ne.s32.totalorder %s82, %s83
      %p94 = scmp.eq.s32.totalorder %s18, 0
      %p95 = por %p93, %p94
      %p96 = scmp.ne.s32.totalorder %s82, %s83
      %p97 = scmp.eq.s32.totalorder %s19, 1
      %p98 = por %p96, %p97
      %p100 = scmp.ne.s32.totalorder %s83, %s99
      %p101 = scmp.eq.s32.totalorder %s19, 0
      %p102 = por %p100, %p101
      %s103 = ssub.s32 %s23, %s34
      %p104 = scmp.eq.s32.totalorder %s103, 0
      %s106 = sadd.s32 %s105, 1
      %s107 = scalar_select %p104, %s105, %s106
      %p110 = pneg %p104
      %p111 = scmp.eq.s32.totalorder %s13, 1
      %p112 = por %p110, %p111
      %p113 = scmp.ne.s32.totalorder %s105, %s108
      %p114 = scmp.eq.s32.totalorder %s13, 0
      %p115 = por %p113, %p114
      %p116 = scmp.ne.s32.totalorder %s105, %s108
      %p117 = scmp.eq.s32.totalorder %s18, 1
      %p118 = por %p116, %p117
      %p119 = scmp.ne.s32.totalorder %s108, %s109
      %p120 = scmp.eq.s32.totalorder %s18, 0
      %p121 = por %p119, %p120
      %p122 = scmp.ne.s32.totalorder %s108, %s109
      %p123 = scmp.eq.s32.totalorder %s19, 1
      %p124 = por %p122, %p123
      %p126 = scmp.ne.s32.totalorder %s109, %s125
      %p127 = scmp.eq.s32.totalorder %s19, 0
      %p128 = por %p126, %p127
      %s129 = ssub.s32 %s23, %s34
      %p130 = scmp.eq.s32.totalorder %s129, 0
      %s132 = sadd.s32 %s131, 1
      %s133 = scalar_select %p130, %s131, %s132
      %p136 = pneg %p130
      %p137 = scmp.eq.s32.totalorder %s13, 1
      %p138 = por %p136, %p137
      %p139 = scmp.ne.s32.totalorder %s131, %s134
      %p140 = scmp.eq.s32.totalorder %s13, 0
      %p141 = por %p139, %p140
      %p142 = scmp.ne.s32.totalorder %s131, %s134
      %p143 = scmp.eq.s32.totalorder %s18, 1
      %p144 = por %p142, %p143
      %p145 = scmp.ne.s32.totalorder %s134, %s135
      %p146 = scmp.eq.s32.totalorder %s18, 0
      %p147 = por %p145, %p146
      %p148 = scmp.ne.s32.totalorder %s134, %s135
      %p149 = scmp.eq.s32.totalorder %s19, 1
      %p150 = por %p148, %p149
      %p152 = scmp.ne.s32.totalorder %s135, %s151
      %p153 = scmp.eq.s32.totalorder %s19, 0
      %p154 = por %p152, %p153
      %s155 = ssub.s32 %s21, %s42
      %s156 = ssub.s32 %s20, %s46
      %s157 = sor.u32 %s155, %s156
      %s158 = ssub.s32 %s22, %s38
      %s159 = sor.u32 %s157, %s158
      %s160 = ssub.s32 %s23, %s34
      %s161 = sor.u32 %s159, %s160
      %p162 = scmp.eq.s32.totalorder %s161, 0
      %s164 = sadd.s32 %s163, 1
      %s165 = scalar_select %p162, %s163, %s164
      %p168 = pneg %p162
      %p169 = scmp.eq.s32.totalorder %s13, 1
      %p170 = por %p168, %p169
      %p171 = scmp.ne.s32.totalorder %s163, %s166
      %p172 = scmp.eq.s32.totalorder %s13, 0
      %p173 = por %p171, %p172
      %p174 = scmp.ne.s32.totalorder %s163, %s166
      %p175 = scmp.eq.s32.totalorder %s18, 1
      %p176 = por %p174, %p175
      %p177 = scmp.ne.s32.totalorder %s166, %s167
      %p178 = scmp.eq.s32.totalorder %s18, 0
      %p179 = por %p177, %p178
      %p180 = scmp.ne.s32.totalorder %s166, %s167
      %p181 = scmp.eq.s32.totalorder %s19, 1
      %p182 = por %p180, %p181
      %p184 = scmp.ne.s32.totalorder %s167, %s183
      %p185 = scmp.eq.s32.totalorder %s19, 0
      %p186 = por %p184, %p185
      %p187 = scmp.le.s32.totalorder 1, %s13
      %p188 = scmp.lt.s32.totalorder %s13, 3
      %p189 = pnand %p187, %p188
      %p190 = pneg %p189
      // Predicated region
      $region9: #{joiner_forward.1} parent=5 // pred_check
        _
      $region10: #{joiner_forward.1} parent=5 // pred_check_branch
        %192 = sbr.rel (%p189) target = $region12
      $region11: #{joiner_forward.1} parent=5 // pred_region
        %s193 = ssub.s32 %s13, 1
        // Predicated region
        $region13: #{joiner_forward.1} parent=11 // pred_check
          %p194 = pneg %p121
        $region14: #{joiner_forward.1} parent=11 // pred_check_branch
          %196 = sbr.rel (%p194) target = $region16
        $region15: #{joiner_forward.1} parent=11 // pred_region
          %p197 = scmp.lt.s32.totalorder %s27, 0
          %s198 = scalar_select %p197, %s27, 0
          %s199 = smul.addr %s198, 4
          %s200 = scalar_lea.vmem %s2, %s199
        $region16: #{joiner_forward.1} parent=11 // pred_fallthru
          _
        // Predicated region
        $region17: #{joiner_forward.1} parent=11 // pred_check
          %p201 = pneg %p147
        $region18: #{joiner_forward.1} parent=11 // pred_check_branch
          %203 = sbr.rel (%p201) target = $region20
        $region19: #{joiner_forward.1} parent=11 // pred_region
          %p204 = scmp.lt.s32.totalorder %s27, 0
          %s205 = scalar_select %p204, %s27, 0
          %s206 = scalar_lea.vmem %s3, %s205
        $region20: #{joiner_forward.1} parent=11 // pred_fallthru
          _
      $region12: #{joiner_forward.1} parent=5 // pred_fallthru
        _
      %p207 = scmp.lt.s32.totalorder %s13, 2
      // Predicated region
      $region21: #{joiner_forward.1} parent=5 // pred_check
        %p208 = pneg %p207
      $region22: #{joiner_forward.1} parent=5 // pred_check_branch
        %210 = sbr.rel (%p208) target = $region24
      $region23: #{joiner_forward.1} parent=5 // pred_region
        // Predicated region
        $region25: #{joiner_forward.1} parent=23 // pred_check
          %p211 = pneg %p61
        $region26: #{joiner_forward.1} parent=23 // pred_check_branch
          %213 = sbr.rel (%p211) target = $region28
        $region27: #{joiner_forward.1} parent=23 // pred_region
          %p214 = scmp.lt.s32.totalorder %s21, 1
          %s215 = scalar_select %p214, %s21, 1
          %p216 = scmp.lt.s32.totalorder %s20, 0
          %s217 = scalar_select %p216, %s20, 0
          %s218 = sadd.s32 %s217, %s215
          %s219 = smul.addr %s218, 8
          %s220 = scalar_lea.vmem %s0, %s219
        $region28: #{joiner_forward.1} parent=23 // pred_fallthru
          _
        // Predicated region
        $region29: #{joiner_forward.1} parent=23 // pred_check
          %p221 = pneg %p89
        $region30: #{joiner_forward.1} parent=23 // pred_check_branch
          %223 = sbr.rel (%p221) target = $region32
        $region31: #{joiner_forward.1} parent=23 // pred_region
          %p224 = scmp.lt.s32.totalorder %s21, 1
          %s225 = scalar_select %p224, %s21, 1
          %p226 = scmp.lt.s32.totalorder %s22, 0
          %s227 = scalar_select %p226, %s22, 0
          %s228 = sadd.s32 %s227, %s225
          %s229 = smul.addr %s228, 8
          %s230 = scalar_lea.vmem %s1, %s229
        $region32: #{joiner_forward.1} parent=23 // pred_fallthru
          _
      $region24: #{joiner_forward.1} parent=5 // pred_fallthru
        _
      %p231 = scmp.le.s32.totalorder 1, %s13
      %p232 = scmp.lt.s32.totalorder %s13, 3
      %p233 = pnand %p231, %p232
      %p234 = pneg %p233
      // Predicated region
      $region33: #{joiner_forward.1} parent=5 // pred_check
        _
      $region34: #{joiner_forward.1} parent=5 // pred_check_branch
        %236 = sbr.rel (%p233) target = $region36
      $region35: #{joiner_forward.1} parent=5 // pred_region
        %s237 = ssub.s32 %s13, 1
        %p238 = scmp.lt.s32.totalorder %s25, 1
        %s239 = scalar_select %p238, %s25, 1
        %p240 = scmp.lt.s32.totalorder %s24, 0
        %s241 = scalar_select %p240, %s24, 0
        %s242 = sadd.s32 %s241, %s239
        %s243 = smul.addr %s242, 8
        %s244 = scalar_lea.vmem %s0, %s243
        %p245 = pneg %p67
        %p246 = pneg %p64
        %p247 = scmp.lt.s32.totalorder %s25, 1
        %s248 = scalar_select %p247, %s25, 1
        %p249 = scmp.lt.s32.totalorder %s26, 0
        %s250 = scalar_select %p249, %s26, 0
        %s251 = sadd.s32 %s250, %s248
        %s252 = smul.addr %s251, 8
        %s253 = scalar_lea.vmem %s1, %s252
        %p254 = pneg %p95
        %p255 = pneg %p92
        %p256 = scmp.lt.s32.totalorder %s27, 0
        %s257 = scalar_select %p256, %s27, 0
        %s258 = smul.addr %s257, 4
        %s259 = scalar_lea.vmem %s2, %s258
        %p260 = pneg %p121
        %p261 = pneg %p118
        %p262 = scmp.lt.s32.totalorder %s27, 0
        %s263 = scalar_select %p262, %s27, 0
        %s264 = scalar_lea.vmem %s3, %s263
        %p265 = pneg %p147
        %p266 = pneg %p144
        %p267 = pneg %p179
        %p268 = pneg %p176
        %s269 = sand.u32 %s166, 1
        %s270 = scalar_lea.sflag [#allocation4], %s269
        %s271 = sand.u32 %s166, 1
        %s272 = smul.addr %s271, 64
        %s273 = scalar_lea.vmem [#allocation3], %s272
        %p274 = scmp.lt.s32.totalorder %s25, 1
        %s275 = scalar_select %p274, %s25, 1
        %p276 = scmp.lt.s32.totalorder %s24, 0
        %s277 = scalar_select %p276, %s24, 0
        %s278 = sadd.s32 %s277, %s275
        %s279 = smul.addr %s278, 8
        %s280 = scalar_lea.vmem %s0, %s279
        %p281 = scmp.lt.s32.totalorder %s25, 1
        %s282 = scalar_select %p281, %s25, 1
        %p283 = scmp.lt.s32.totalorder %s26, 0
        %s284 = scalar_select %p283, %s26, 0
        %s285 = sadd.s32 %s284, %s282
        %s286 = smul.addr %s285, 8
        %s287 = scalar_lea.vmem %s1, %s286
        %p288 = scmp.lt.s32.totalorder %s27, 0
        %s289 = scalar_select %p288, %s27, 0
        %s290 = smul.addr %s289, 4
        %s291 = scalar_lea.vmem %s2, %s290
        %p292 = scmp.lt.s32.totalorder %s27, 0
        %s293 = scalar_select %p292, %s27, 0
        %s294 = scalar_lea.vmem %s3, %s293
        %s295 = smul.u32 8, %s24
        %p297 = scmp.eq.s32.totalorder %s27, 0
        // Predicated region
        $region37: #{joiner_forward.1} parent=35 // pred_check
          %p298 = pneg %p297
        $region38: #{joiner_forward.1} parent=35 // pred_check_branch
          %300 = sbr.rel (%p298) target = $region40
        $region39: #{joiner_forward.1} parent=35 // pred_region
          %v301 = vld [vmem:[%s280] sm:$0xff]
          %v302 = vpack.c.bf16 %v301, %v301
          %v303 = vld [vmem:[%s287] sm:$0xff]
          %v304 = vpack.c.bf16 %v303, %v303
          %v307 = vunpack.c.l.s4 1966171168
          %v308 = vunpack.c.0.s8 %v307
          %v309 = vlaneseq
          %v310 = vshrl.u32 %v309, 7
          %v311 = vsub.s32 %v308, %v310
          %v312 = vrot.slane %v302, %v311
          %v313 = vcombine.high %v312, %v312
          %v315 = vunpack.c.l.s4 1966171168
          %v316 = vunpack.c.0.s8 %v315
          %v317 = vlaneseq
          %v318 = vshrl.u32 %v317, 7
          %v319 = vsub.s32 %v316, %v318
          %v320 = vrot.slane %v312, %v319
          %v322 = vunpack.c.l.s4 1966171168
          %v323 = vunpack.c.0.s8 %v322
          %v324 = vlaneseq
          %v325 = vshrl.u32 %v324, 7
          %v326 = vsub.s32 %v323, %v325
          %v327 = vrot.slane %v313, %v326
          %v328 = vcombine.high %v320, %v320
          %v329 = vcombine.high %v327, %v327
          %v330 = vunpack.i.l.s16 %v320
          %v331 = vunpack.i.h.s16 %v320
          %v332 = vunpack.i.l.s16 %v327
          %v333 = vunpack.i.h.s16 %v327
          %v334 = vunpack.i.l.s16 %v328
          %v335 = vunpack.i.h.s16 %v328
          %v336 = vunpack.i.l.s16 %v329
          %v337 = vunpack.i.h.s16 %v329
          %v338 = vpack.i.b16 %v330, %v330
          %v339 = vpack.i.b16 %v331, %v331
          %v340 = vpack.i.b16 %v332, %v332
          %v341 = vpack.i.b16 %v333, %v333
          %v342 = vpack.i.b16 %v334, %v334
          %v343 = vpack.i.b16 %v335, %v335
          %v344 = vpack.i.b16 %v336, %v336
          %v345 = vpack.i.b16 %v337, %v337
          %v346 = vlaneseq
          %v347 = vshrl.u32 %v346, 7
          %v348 = vsub.s32 0, %v347
          %v349 = vrot.slane %v338, %v348
          %v350 = vlaneseq
          %v351 = vshrl.u32 %v350, 7
          %v352 = vsub.s32 0, %v351
          %v353 = vrot.slane %v339, %v352
          %v354 = vlaneseq
          %v355 = vshrl.u32 %v354, 7
          %v356 = vsub.s32 0, %v355
          %v357 = vrot.slane %v340, %v356
          %v358 = vlaneseq
          %v359 = vshrl.u32 %v358, 7
          %v360 = vsub.s32 0, %v359
          %v361 = vrot.slane %v341, %v360
          %v362 = vlaneseq
          %v363 = vshrl.u32 %v362, 7
          %v364 = vsub.s32 0, %v363
          %v365 = vrot.slane %v342, %v364
          %v366 = vlaneseq
          %v367 = vshrl.u32 %v366, 7
          %v368 = vsub.s32 0, %v367
          %v369 = vrot.slane %v343, %v368
          %v370 = vlaneseq
          %v371 = vshrl.u32 %v370, 7
          %v372 = vsub.s32 0, %v371
          %v373 = vrot.slane %v344, %v372
          %v374 = vlaneseq
          %v375 = vshrl.u32 %v374, 7
          %v376 = vsub.s32 0, %v375
          %v377 = vrot.slane %v345, %v376
          %v379 = vpack.i.b16 %v349, %v349
          %v381 = vlaneseq
          %v382 = vshrl.u32 %v381, 7
          %v383 = vsub.s32 0, %v382
          %v384 = vrot.slane %v379, %v383
          %v386 = vpack.i.b16 %v353, %v353
          %v388 = vlaneseq
          %v389 = vshrl.u32 %v388, 7
          %v390 = vsub.s32 0, %v389
          %v391 = vrot.slane %v386, %v390
          %v393 = vpack.i.b16 %v357, %v357
          %v395 = vlaneseq
          %v396 = vshrl.u32 %v395, 7
          %v397 = vsub.s32 0, %v396
          %v398 = vrot.slane %v393, %v397
          %v400 = vpack.i.b16 %v361, %v361
          %v402 = vlaneseq
          %v403 = vshrl.u32 %v402, 7
          %v404 = vsub.s32 0, %v403
          %v405 = vrot.slane %v400, %v404
          %v407 = vpack.i.b16 %v365, %v365
          %v409 = vlaneseq
          %v410 = vshrl.u32 %v409, 7
          %v411 = vsub.s32 0, %v410
          %v412 = vrot.slane %v407, %v411
          %v414 = vpack.i.b16 %v369, %v369
          %v416 = vlaneseq
          %v417 = vshrl.u32 %v416, 7
          %v418 = vsub.s32 0, %v417
          %v419 = vrot.slane %v414, %v418
          %v421 = vpack.i.b16 %v373, %v373
          %v423 = vlaneseq
          %v424 = vshrl.u32 %v423, 7
          %v425 = vsub.s32 0, %v424
          %v426 = vrot.slane %v421, %v425
          %v428 = vpack.i.b16 %v377, %v377
          %v430 = vlaneseq
          %v431 = vshrl.u32 %v430, 7
          %v432 = vsub.s32 0, %v431
          %v433 = vrot.slane %v428, %v432
          %v434 = vadd.bf16 %v384, %v304
          %v435 = vadd.bf16 %v391, %v304
          %v436 = vadd.bf16 %v398, %v304
          %v437 = vadd.bf16 %v405, %v304
          %v438 = vadd.bf16 %v412, %v304
          %v439 = vadd.bf16 %v419, %v304
          %v440 = vadd.bf16 %v426, %v304
          %v441 = vadd.bf16 %v433, %v304
          %v442 = vtanh.bf16.pop %v434
          %v443 = vtanh.bf16.pop %v435
          %v444 = vtanh.bf16.pop %v436
          %v445 = vtanh.bf16.pop %v437
          %v446 = vtanh.bf16.pop %v438
          %v447 = vtanh.bf16.pop %v439
          %v448 = vtanh.bf16.pop %v440
          %v449 = vtanh.bf16.pop %v441
          %v458 = vunpack.c.l.b16 %v442
          %v459 = vunpack.c.l.b16 %v443
          %v460 = vunpack.c.l.b16 %v444
          %v461 = vunpack.c.l.b16 %v445
          %v462 = vunpack.c.l.b16 %v446
          %v463 = vunpack.c.l.b16 %v447
          %v464 = vunpack.c.l.b16 %v448
          %v465 = vunpack.c.l.b16 %v449
          %v466 = vpack.c.b16 %v459, %v458
          %v467 = vpack.c.b16 %v461, %v460
          %v468 = vpack.c.b16 %v463, %v462
          %v469 = vpack.c.b16 %v465, %v464
          %474 = vst [vmem:[#allocation2] sm:$0xff] %v466
          %475 = vst [vmem:[#allocation2 + $0x8] sm:$0xff] %v467
          %476 = vst [vmem:[#allocation2 + $0x10] sm:$0xff] %v468
          %477 = vst [vmem:[#allocation2 + $0x18] sm:$0xff] %v469
        $region40: #{joiner_forward.1} parent=35 // pred_fallthru
          _
        %v478 = vld [vmem:[#allocation2] sm:$0xff]
        %v479 = vld [vmem:[#allocation2 + $0x8] sm:$0xff]
        %v480 = vld [vmem:[#allocation2 + $0x10] sm:$0xff]
        %v481 = vld [vmem:[#allocation2 + $0x18] sm:$0xff]
        %v482 = vld [vmem:[%s291] sm:$0xf]
        %v483 = vld [vmem:[%s291 + $0x4] sm:$0xf]
        %v484 = vld [vmem:[%s291 + $0x8] sm:$0xf]
        %v485 = vld [vmem:[%s291 + $0xc] sm:$0xf]
        %v486 = vld [vmem:[%s291 + $0x10] sm:$0xf]
        %v487 = vld [vmem:[%s291 + $0x14] sm:$0xf]
        %v488 = vld [vmem:[%s291 + $0x18] sm:$0xf]
        %v489 = vld [vmem:[%s291 + $0x1c] sm:$0xf]
        %v490 = vld [vmem:[%s291 + $0x20] sm:$0xf]
        %v491 = vld [vmem:[%s291 + $0x24] sm:$0xf]
        %v492 = vld [vmem:[%s291 + $0x28] sm:$0xf]
        %v493 = vld [vmem:[%s291 + $0x2c] sm:$0xf]
        %v494 = vld [vmem:[%s291 + $0x30] sm:$0xf]
        %v495 = vld [vmem:[%s291 + $0x34] sm:$0xf]
        %v496 = vld [vmem:[%s291 + $0x38] sm:$0xf]
        %v497 = vld [vmem:[%s291 + $0x3c] sm:$0xf]
        %v498 = vld [vmem:[%s294] sm:$0x1]
        %v500 = vlaneseq
        %v501 = vshrl.u32 %v500, 7
        %v502 = vsub.s32 0, %v501
        %v503 = vrot.slane %v498, %v502
        %v521 = vunpack.c.l.b16 %v482
        %v522 = vunpack.c.l.b16 %v483
        %v523 = vunpack.c.l.b16 %v484
        %v524 = vunpack.c.l.b16 %v485
        %v525 = vunpack.c.l.b16 %v486
        %v526 = vunpack.c.l.b16 %v487
        %v527 = vunpack.c.l.b16 %v488
        %v528 = vunpack.c.l.b16 %v489
        %v529 = vunpack.c.l.b16 %v490
        %v530 = vunpack.c.l.b16 %v491
        %v531 = vunpack.c.l.b16 %v492
        %v532 = vunpack.c.l.b16 %v493
        %v533 = vunpack.c.l.b16 %v494
        %v534 = vunpack.c.l.b16 %v495
        %v535 = vunpack.c.l.b16 %v496
        %v536 = vunpack.c.l.b16 %v497
        %v537 = vpack.c.b16 %v522, %v521
        %v538 = vpack.c.b16 %v524, %v523
        %v539 = vpack.c.b16 %v526, %v525
        %v540 = vpack.c.b16 %v528, %v527
        %v541 = vpack.c.b16 %v530, %v529
        %v542 = vpack.c.b16 %v532, %v531
        %v543 = vpack.c.b16 %v534, %v533
        %v544 = vpack.c.b16 %v536, %v535
        %553 = vmatprep.subr.bf16.mxu0 0
        %554 = vmatpush1.bf16.msra.mxu0 %v537
        %555 = vmatprep.subr.bf16.mxu0 0
        %556 = vmatpush1.bf16.msra.mxu0 %v538
        %557 = vmatprep.subr.bf16.mxu0 0
        %558 = vmatpush1.bf16.msra.mxu0 %v539
        %559 = vmatprep.subr.bf16.mxu0 0
        %560 = vmatpush1.bf16.msra.mxu0 %v540
        %561 = vmatprep.subr.bf16.mxu0 0
        %562 = vmatpush1.bf16.msra.mxu0 %v541
        %563 = vmatprep.subr.bf16.mxu0 0
        %564 = vmatpush1.bf16.msra.mxu0 %v542
        %565 = vmatprep.subr.bf16.mxu0 0
        %566 = vmatpush1.bf16.msra.mxu0 %v543
        %567 = vmatprep.subr.bf16.mxu0 0
        %568 = vmatpush1.bf16.msra.mxu0 %v544
        %569 = vmatprep.subr.bf16.mxu0 0
        %570 = vmatpush1.bf16.msra.mxu0 0
        %571 = vmatprep.subr.bf16.mxu0 0
        %572 = vmatpush1.bf16.msra.mxu0 0
        %573 = vmatprep.subr.bf16.mxu0 0
        %574 = vmatpush1.bf16.msra.mxu0 0
        %575 = vmatprep.subr.bf16.mxu0 0
        %576 = vmatpush1.bf16.msra.mxu0 0
        %577 = vmatprep.subr.bf16.mxu0 0
        %578 = vmatpush1.bf16.msra.mxu0 0
        %579 = vmatprep.subr.bf16.mxu0 0
        %580 = vmatpush1.bf16.msra.mxu0 0
        %581 = vmatprep.subr.bf16.mxu0 0
        %582 = vmatpush1.bf16.msra.mxu0 0
        %583 = vmatprep.subr.bf16.mxu0 0
        %584 = vmatpush1.bf16.msra.mxu0 0
        %585 = vmatprep.mubr.bf16.mxu0 0
        %586 = vmatmul.mubr.bf16.gmra.mrb[0].mxu0 %v478
        %v587 = vpop.f32.mrb[0].mxu0
        %v588 = vadd.f32 %v503, %v587
        %v589 = vpop.f32.mrb[0].mxu0
        %v590 = vpop.f32.mrb[0].mxu0
        %v591 = vadd.f32 %v503, %v590
        %v592 = vpop.f32.mrb[0].mxu0
        %593 = vmatprep.mubr.bf16.mxu0 0
        %594 = vmatmul.mubr.bf16.gmra.mrb[0].mxu0 %v479
        %v595 = vpop.f32.mrb[0].mxu0
        %v596 = vadd.f32 %v503, %v595
        %v597 = vpop.f32.mrb[0].mxu0
        %v598 = vpop.f32.mrb[0].mxu0
        %v599 = vadd.f32 %v503, %v598
        %v600 = vpop.f32.mrb[0].mxu0
        %601 = vmatprep.mubr.bf16.mxu0 0
        %602 = vmatmul.mubr.bf16.gmra.mrb[0].mxu0 %v480
        %v603 = vpop.f32.mrb[0].mxu0
        %v604 = vadd.f32 %v503, %v603
        %v605 = vpop.f32.mrb[0].mxu0
        %v606 = vpop.f32.mrb[0].mxu0
        %v607 = vadd.f32 %v503, %v606
        %v608 = vpop.f32.mrb[0].mxu0
        %609 = vmatprep.mubr.bf16.mxu0 0
        %610 = vmatmul.mubr.bf16.gmra.mrb[0].mxu0 %v481
        %v611 = vpop.f32.mrb[0].mxu0
        %v612 = vadd.f32 %v503, %v611
        %v613 = vpop.f32.mrb[0].mxu0
        %v614 = vpop.f32.mrb[0].mxu0
        %v615 = vadd.f32 %v503, %v614
        %v616 = vpop.f32.mrb[0].mxu0
        %617 = vdwg.mxu0
        %vm618 = vcmask 130048
        %619 = vst.msk [vmem:[%s273] sm:$0xff] %vm618, %v588
        %620 = vst.msk [vmem:[%s273 + $0x8] sm:$0xff] %vm618, %v591
        %621 = vst.msk [vmem:[%s273 + $0x10] sm:$0xff] %vm618, %v596
        %622 = vst.msk [vmem:[%s273 + $0x18] sm:$0xff] %vm618, %v599
        %623 = vst.msk [vmem:[%s273 + $0x20] sm:$0xff] %vm618, %v604
        %624 = vst.msk [vmem:[%s273 + $0x28] sm:$0xff] %vm618, %v607
        %625 = vst.msk [vmem:[%s273 + $0x30] sm:$0xff] %vm618, %v612
        %626 = vst.msk [vmem:[%s273 + $0x38] sm:$0xff] %vm618, %v615
        %s627 = sand.u32 %s166, 1
        %s628 = scalar_lea.sflag [#allocation4], %s627
        %s629 = sand.u32 %s166, 1
        %s630 = smul.addr %s629, 64
        %s631 = scalar_lea.vmem [#allocation3], %s630
        // Predicated region
        $region41: #{joiner_forward.1} parent=35 // pred_check
          %p632 = pneg %p176
        $region42: #{joiner_forward.1} parent=35 // pred_check_branch
          %634 = sbr.rel (%p632) target = $region44
        $region43: #{joiner_forward.1} parent=35 // pred_region
          %s635 = smul.u32 8, %s24
          %s637 = ssub.s32 1024, 1024
          %638 = vsyncadd %s628, %s637
          %s639 = sadd.s32 %s27, %s26
          %s640 = sadd.s32 %s639, %s635
          %s641 = smul.addr %s25, 8
          %s642 = sadd.s32 %s640, %s641
          %s643 = smul.addr %s642, 128
          %s644 = scalar_lea.hbm %s4, %s643
          %s645 = sshll.u32 %s631, 4
          %s646 = int_to_ptr.vmem [resolvable:$true] %s645
          %651 = dma.vmem_to_hbm [thread:$0]  %s646, 1024, %s644, %s628, 128, 128, 8
        $region44: #{joiner_forward.1} parent=35 // pred_fallthru
          _
      $region36: #{joiner_forward.1} parent=5 // pred_fallthru
        _
      %p652 = scmp.le.s32.totalorder 2, %s13
      // Predicated region
      $region45: #{joiner_forward.1} parent=5 // pred_check
        %p653 = pneg %p652
      $region46: #{joiner_forward.1} parent=5 // pred_check_branch
        %655 = sbr.rel (%p653) target = $region48
      $region47: #{joiner_forward.1} parent=5 // pred_region
        %s656 = ssub.s32 %s13, 2
        // Predicated region
        $region49: #{joiner_forward.1} parent=47 // pred_check
          %p657 = pneg %p182
        $region50: #{joiner_forward.1} parent=47 // pred_check_branch
          %659 = sbr.rel (%p657) target = $region52
        $region51: #{joiner_forward.1} parent=47 // pred_region
          %s660 = sand.u32 %s167, 1
          %s661 = scalar_lea.sflag [#allocation4], %s660
          %s662 = sand.u32 %s167, 1
          %s663 = smul.addr %s662, 64
          %s664 = scalar_lea.vmem [#allocation3], %s663
          %665 = dma.done %s661, 1024
        $region52: #{joiner_forward.1} parent=47 // pred_fallthru
          _
      $region48: #{joiner_forward.1} parent=5 // pred_fallthru
        _
    $region6: #{joiner_forward.1} parent=1 // loop_footer
      %s17 = sadd.s32 1, %s13
    $region7: #{joiner_forward.1} parent=1 // loop_footer_branch
      %12 = sbr.rel target = $region3
    $region8: #{joiner_forward.1} parent=1 // loop_exit
      _
    %666 = vsyncpa [#allocation4], 1
    %s667 = scalar_lea.sflag [#allocation4], 1
    %668 = vsyncpa %s667, 1

</llo_original>
